<compile_context>
chip_gen: v5e
topology: v5e:2x2
jax: 0.10.0
libtpu: 0.0.40
codegen_flags: <defaults>
</compile_context>

<pallas_src>
import functools
from typing import NamedTuple

import numpy as np
import jax
import jax.numpy as jnp
from jax.experimental import pallas as pl
from jax.experimental.pallas import tpu as pltpu

LANE = 128
SUBLANE = 8


def _roundup(n, m):
    return ((n + m - 1) // m) * m


class ActorMeta(NamedTuple):
    S: int        # state_size
    A: int        # action_size
    W: int        # padded lane width (multiple of 128)
    w1_off: int   # row offsets inside the packed slab (all multiples of 8)
    w2_off: int
    w3_off: int
    vec_off: int


def actor_kernel(x_ref, slab_ref, out_ref, *, dims):
    """Single-block fused Actor forward.

    x_ref    : [Bp, S]      f32 states (rows >= B_real are zero padding)
    slab_ref : [R,  W]      packed params:
                              rows [w1_off : w1_off+S)   = fc1 weight  [S,  W]
                              rows [w2_off : w2_off+W)   = fc2 weight  [W,  W]
                              rows [w3_off : w3_off+W)   = fc3 weight  [W,  W]
                              row   vec_off+0            = gamma (lanes :S)
                              row   vec_off+1            = beta  (lanes :S)
                              rows  vec_off+2..4         = b1, b2, b3 (lane-padded)
    out_ref  : [Bp, W]      lane-dense padded output (valid actions in [:B, :A])
    """
    S, B_real, w1_off, w2_off, w3_off, vec_off = dims
    W = slab_ref.shape[1]

    x = x_ref[...]                                            # [Bp, S]

    # --- static, zero-cost views into the packed slab ---
    w1 = slab_ref[w1_off:w1_off + S, :]                       # [S, W]
    w2 = slab_ref[w2_off:w2_off + W, :]                       # [W, W]
    w3 = slab_ref[w3_off:w3_off + W, :]                       # [W, W]
    gamma = slab_ref[vec_off + 0:vec_off + 1, :S]             # [1, S]
    beta = slab_ref[vec_off + 1:vec_off + 2, :S]              # [1, S]
    b1 = slab_ref[vec_off + 2:vec_off + 3, :]                 # [1, W]
    b2 = slab_ref[vec_off + 3:vec_off + 4, :]                 # [1, W]
    b3 = slab_ref[vec_off + 4:vec_off + 5, :]                 # [1, W]

    # --- BatchNorm1d (training mode), folded into one scale/shift ---
    # Independent reductions (pipeline through the XLU); padded batch rows are
    # zero so the sums equal the real-batch sums; scale by 1/B_real.
    inv_b = jnp.float32(1.0 / B_real)
    mean = jnp.sum(x, axis=0, keepdims=True) * inv_b
    msq = jnp.sum(x * x, axis=0, keepdims=True) * inv_b
    var = msq - mean * mean
    scale = gamma * jax.lax.rsqrt(var + 1e-5)
    shift = beta - mean * scale
    x_bn = x * scale + shift

    # --- fc1 + leaky_relu ---
    h1 = jnp.dot(x_bn, w1, preferred_element_type=jnp.float32) + b1
    h1 = jnp.maximum(h1, 0.01 * h1)

    # --- fc2 + leaky_relu ---
    h2 = jnp.dot(h1, w2, preferred_element_type=jnp.float32) + b2
    h2 = jnp.maximum(h2, 0.01 * h2)

    # --- fc3 + tanh (lane-dense, unmasked store) ---
    h3 = jnp.dot(h2, w3, preferred_element_type=jnp.float32) + b3
    out_ref[...] = jnp.tanh(h3)


def pack_actor_params(params):
    """One-time packing of all params into a single lane-dense VMEM slab.

    Done in numpy so nothing here ever runs on the per-forward critical path.
    """
    gamma, beta, w1, b1, w2, b2, w3, b3 = params
    S, H1 = w1.shape
    H2 = w2.shape[1]
    A = w3.shape[1]

    # Uniform padded lane width (multiple of 128), wide enough for gamma/beta.
    W = max(_roundup(max(H1, H2, A), LANE), _roundup(S, LANE))
    S8 = _roundup(S, SUBLANE)

    w1_off = 0
    w2_off = S8
    w3_off = w2_off + W
    vec_off = w3_off + W
    rows = vec_off + SUBLANE          # multiple of 8 by construction

    slab = np.zeros((rows, W), np.float32)
    slab[w1_off:w1_off + S, :H1] = np.asarray(w1, np.float32)
    slab[w2_off:w2_off + H1, :H2] = np.asarray(w2, np.float32)
    slab[w3_off:w3_off + H2, :A] = np.asarray(w3, np.float32)
    slab[vec_off + 0, :S] = np.asarray(gamma, np.float32).reshape(-1)
    slab[vec_off + 1, :S] = np.asarray(beta, np.float32).reshape(-1)
    slab[vec_off + 2, :H1] = np.asarray(b1, np.float32).reshape(-1)
    slab[vec_off + 3, :H2] = np.asarray(b2, np.float32).reshape(-1)
    slab[vec_off + 4, :A] = np.asarray(b3, np.float32).reshape(-1)

    meta = ActorMeta(S=S, A=A, W=W, w1_off=w1_off, w2_off=w2_off,
                     w3_off=w3_off, vec_off=vec_off)
    return jnp.asarray(slab), meta


def actor_forward(state, slab, meta, return_padded=False):
    """state: [B, state_size] f32 -> actions: [B, action_size] f32.

    Set return_padded=True to get the raw (Bp, 128) kernel output (padded
    lanes are exactly 0) and skip the final slice on launch-bound paths.
    """
    B, S = state.shape
    assert S == meta.S, "state width does not match packed params"

    Bp = _roundup(B, SUBLANE)
    x = state
    if Bp != B:
        # Zero rows keep the in-kernel BN sums exact (scaled by 1/B_real).
        x = jnp.zeros((Bp, S), state.dtype).at[:B].set(state)

    kernel = functools.partial(
        actor_kernel,
        dims=(meta.S, B, meta.w1_off, meta.w2_off, meta.w3_off, meta.vec_off))

    out = pl.pallas_call(
        kernel,
        out_shape=jax.ShapeDtypeStruct((Bp, meta.W), jnp.float32),
        # Tiny working set -> single grid point, both operands one VMEM block.
        in_specs=[pl.BlockSpec(memory_space=pltpu.MemorySpace.VMEM)] * 2,
        out_specs=pl.BlockSpec(memory_space=pltpu.MemorySpace.VMEM),
    )(x, slab)

    if return_padded:
        return out
    return out[:B, :meta.A]


def init_actor_params(key, state_size, action_size, fc_size):
    """Deterministic init mirroring Actor.__init__ / reset_parameters.

    NB: hidden_init() in the reference uses weight.size()[0] which for
    nn.Linear is out_features, so lim = 1/sqrt(out_features).
    Weights are stored transposed: [in_features, out_features].
    """
    h1, h2 = 8 * fc_size, 4 * fc_size
    ks = jax.random.split(key, 6)

    lim1 = 1.0 / np.sqrt(h1)
    lim2 = 1.0 / np.sqrt(h2)
    lim3 = 0.003

    w1 = jax.random.uniform(ks[0], (state_size, h1), jnp.float32, -lim1, lim1)
    w2 = jax.random.uniform(ks[1], (h1, h2), jnp.float32, -lim2, lim2)
    w3 = jax.random.uniform(ks[2], (h2, action_size), jnp.float32, -lim3, lim3)

    # Biases keep PyTorch default Linear init: U(-1/sqrt(fan_in), 1/sqrt(fan_in)).
    b1 = jax.random.uniform(ks[3], (1, h1), jnp.float32,
                            -1.0 / np.sqrt(state_size), 1.0 / np.sqrt(state_size))
    b2 = jax.random.uniform(ks[4], (1, h2), jnp.float32,
                            -1.0 / np.sqrt(h1), 1.0 / np.sqrt(h1))
    b3 = jax.random.uniform(ks[5], (1, action_size), jnp.float32,
                            -1.0 / np.sqrt(h2), 1.0 / np.sqrt(h2))

    # BatchNorm1d affine params at init: gamma=1, beta=0.
    gamma = jnp.ones((1, state_size), jnp.float32)
    beta = jnp.zeros((1, state_size), jnp.float32)

    return (gamma, beta, w1, b1, w2, b2, w3, b3)


def actor_reference(state, params):
    """Pure-JAX reference for correctness checking."""
    gamma, beta, w1, b1, w2, b2, w3, b3 = params
    mean = jnp.mean(state, axis=0, keepdims=True)
    var = jnp.mean((state - mean) ** 2, axis=0, keepdims=True)
    x = (state - mean) * jax.lax.rsqrt(var + 1e-5) * gamma + beta
    x = jax.nn.leaky_relu(x @ w1 + b1, negative_slope=0.01)
    x = jax.nn.leaky_relu(x @ w2 + b2, negative_slope=0.01)
    return jnp.tanh(x @ w3 + b3)


if __name__ == "__main__":
    # config: state_size=16, action_size=4, fc_size=8
    #   -> fc1: 16->64, fc2: 64->32, fc3: 32->4
    state_size, action_size, fc_size = 16, 4, 8
    batch = 8

    key = jax.random.PRNGKey(0)
    k_state, k_params = jax.random.split(key)

    state = jax.random.normal(k_state, (batch, state_size), jnp.float32)
    params = init_actor_params(k_params, state_size, action_size, fc_size)

    # One-time packing (not on the per-forward path).
    slab, meta = pack_actor_params(params)

    out = actor_forward(state, slab, meta)
    out = jax.block_until_ready(out)

    ref = actor_reference(state, params)
    np.testing.assert_allclose(np.asarray(out), np.asarray(ref),
                               rtol=1e-5, atol=1e-5)

    print("KERNEL_OK")
</pallas_src>

<mosaic_0001>
module attributes {stable_mosaic.version = 11 : i64} {
  func.func @actor_kernel(%arg0: memref<8x16xf32, #tpu.memory_space<vmem>>, %arg1: memref<280x128xf32, #tpu.memory_space<vmem>>, %arg2: memref<8x128xf32, #tpu.memory_space<vmem>>) attributes {dimension_semantics = [], scalar_prefetch = 0 : i64, scratch_operands = 0 : i64, tpu.core_type = #tpu.core_type<tc>} {
    %c0 = arith.constant 0 : index
    %c0_0 = arith.constant 0 : index
    %0 = vector.load %arg0[%c0, %c0_0] : memref<8x16xf32, #tpu.memory_space<vmem>>, vector<8x16xf32>
    %c0_1 = arith.constant 0 : index
    %c0_2 = arith.constant 0 : index
    %1 = vector.load %arg1[%c0_1, %c0_2] : memref<280x128xf32, #tpu.memory_space<vmem>>, vector<16x128xf32>
    %c16 = arith.constant 16 : index
    %c0_3 = arith.constant 0 : index
    %2 = vector.load %arg1[%c16, %c0_3] : memref<280x128xf32, #tpu.memory_space<vmem>>, vector<128x128xf32>
    %c144 = arith.constant 144 : index
    %c0_4 = arith.constant 0 : index
    %3 = vector.load %arg1[%c144, %c0_4] : memref<280x128xf32, #tpu.memory_space<vmem>>, vector<128x128xf32>
    %c272 = arith.constant 272 : index
    %c0_5 = arith.constant 0 : index
    %4 = vector.load %arg1[%c272, %c0_5] : memref<280x128xf32, #tpu.memory_space<vmem>>, vector<1x16xf32>
    %c273 = arith.constant 273 : index
    %c0_6 = arith.constant 0 : index
    %5 = vector.load %arg1[%c273, %c0_6] : memref<280x128xf32, #tpu.memory_space<vmem>>, vector<1x16xf32>
    %c274 = arith.constant 274 : index
    %c0_7 = arith.constant 0 : index
    %6 = vector.load %arg1[%c274, %c0_7] : memref<280x128xf32, #tpu.memory_space<vmem>>, vector<1x128xf32>
    %c275 = arith.constant 275 : index
    %c0_8 = arith.constant 0 : index
    %7 = vector.load %arg1[%c275, %c0_8] : memref<280x128xf32, #tpu.memory_space<vmem>>, vector<1x128xf32>
    %c276 = arith.constant 276 : index
    %c0_9 = arith.constant 0 : index
    %8 = vector.load %arg1[%c276, %c0_9] : memref<280x128xf32, #tpu.memory_space<vmem>>, vector<1x128xf32>
    %cst = arith.constant dense<0.000000e+00> : vector<16xf32>
    %9 = vector.multi_reduction <add>, %0, %cst [0] : vector<8x16xf32> to vector<16xf32>
    %10 = vector.shape_cast %9 : vector<16xf32> to vector<1x16xf32>
    %cst_10 = arith.constant 1.250000e-01 : f32
    %11 = vector.broadcast %cst_10 : f32 to vector<1x16xf32>
    %12 = arith.mulf %10, %11 : vector<1x16xf32>
    %13 = arith.mulf %0, %0 : vector<8x16xf32>
    %cst_11 = arith.constant dense<0.000000e+00> : vector<16xf32>
    %14 = vector.multi_reduction <add>, %13, %cst_11 [0] : vector<8x16xf32> to vector<16xf32>
    %15 = vector.shape_cast %14 : vector<16xf32> to vector<1x16xf32>
    %cst_12 = arith.constant 1.250000e-01 : f32
    %16 = vector.broadcast %cst_12 : f32 to vector<1x16xf32>
    %17 = arith.mulf %15, %16 : vector<1x16xf32>
    %18 = arith.mulf %12, %12 : vector<1x16xf32>
    %19 = arith.subf %17, %18 : vector<1x16xf32>
    %cst_13 = arith.constant 9.99999974E-6 : f32
    %20 = vector.broadcast %cst_13 : f32 to vector<1x16xf32>
    %21 = arith.addf %19, %20 : vector<1x16xf32>
    %22 = math.rsqrt %21 : vector<1x16xf32>
    %23 = arith.mulf %4, %22 : vector<1x16xf32>
    %24 = arith.mulf %12, %23 : vector<1x16xf32>
    %25 = arith.subf %5, %24 : vector<1x16xf32>
    %26 = vector.broadcast %23 : vector<1x16xf32> to vector<8x16xf32>
    %27 = arith.mulf %0, %26 : vector<8x16xf32>
    %28 = vector.broadcast %25 : vector<1x16xf32> to vector<8x16xf32>
    %29 = arith.addf %27, %28 : vector<8x16xf32>
    %cst_14 = arith.constant dense<0.000000e+00> : vector<8x128xf32>
    %30 = tpu.matmul %29, %1, %cst_14 {dimension_numbers = #tpu.dot_dimension_numbers<[1], [0], [0], [1], [0, 0, 1, 1], [], []>} : vector<8x16xf32>, vector<16x128xf32>, vector<8x128xf32> -> vector<8x128xf32>
    %31 = vector.broadcast %6 : vector<1x128xf32> to vector<8x128xf32>
    %32 = arith.addf %30, %31 : vector<8x128xf32>
    %cst_15 = arith.constant 0.00999999977 : f32
    %33 = vector.broadcast %cst_15 : f32 to vector<8x128xf32>
    %34 = arith.mulf %33, %32 : vector<8x128xf32>
    %35 = arith.maximumf %32, %34 : vector<8x128xf32>
    %cst_16 = arith.constant dense<0.000000e+00> : vector<8x128xf32>
    %36 = tpu.matmul %35, %2, %cst_16 {dimension_numbers = #tpu.dot_dimension_numbers<[1], [0], [0], [1], [0, 0, 1, 1], [], []>} : vector<8x128xf32>, vector<128x128xf32>, vector<8x128xf32> -> vector<8x128xf32>
    %37 = vector.broadcast %7 : vector<1x128xf32> to vector<8x128xf32>
    %38 = arith.addf %36, %37 : vector<8x128xf32>
    %cst_17 = arith.constant 0.00999999977 : f32
    %39 = vector.broadcast %cst_17 : f32 to vector<8x128xf32>
    %40 = arith.mulf %39, %38 : vector<8x128xf32>
    %41 = arith.maximumf %38, %40 : vector<8x128xf32>
    %cst_18 = arith.constant dense<0.000000e+00> : vector<8x128xf32>
    %42 = tpu.matmul %41, %3, %cst_18 {dimension_numbers = #tpu.dot_dimension_numbers<[1], [0], [0], [1], [0, 0, 1, 1], [], []>} : vector<8x128xf32>, vector<128x128xf32>, vector<8x128xf32> -> vector<8x128xf32>
    %43 = vector.broadcast %8 : vector<1x128xf32> to vector<8x128xf32>
    %44 = arith.addf %42, %43 : vector<8x128xf32>
    %45 = math.tanh %44 : vector<8x128xf32>
    %c0_19 = arith.constant 0 : index
    %c0_20 = arith.constant 0 : index
    %46 = vector.load %arg2[%c0_19, %c0_20] : memref<8x128xf32, #tpu.memory_space<vmem>>, vector<8x128xf32>
    tpu.vector_store %arg2[%c0_19, %c0_20], %45 {strides = array<i32>} : memref<8x128xf32, #tpu.memory_space<vmem>>, vector<8x128xf32>,
    return
  }
}

</mosaic_0001>

<llo_original>
// kernel: tpu_custom_call.1
$region0: #{tpu_custom_call.1}
  #allocation0 [shape = 'u32[]', space=smem, size = 0x4, offset = 0x4, fixed_abs, tag = 'smem constant byte address 0x4 - core index']
  #allocation1 [shape = 'u32[72,128]{1,0:T(1,128)}', space=vmem, size = 0x9000, scoped, tag = 'internal scratch']
  %s0 = inlined_call_operand.hbm [shape: f32[8,16], index: 0, kind: input, shape index: {}]
  %s1 = inlined_call_operand.hbm [shape: f32[280,128], index: 1, kind: input, shape index: {}]
  %s2 = inlined_call_operand.hbm [shape: f32[8,128], index: 2, kind: output, shape index: {}]
  %s3 = sld [smem:[#allocation0]]
  $region26: #{tpu_custom_call.1} parent=0
    _
  %s5 = ssub.s32 1, %s3
  %s6 = scalar_select 0, %s5, %s3
  $region1: #{tpu_custom_call.1} parent=0
    #allocation2 [shape = 'u8[4096]{0}', space=vmem, size = 0x1000, scoped, tag = 'input window, operand 0, single buffered']
    #allocation3 [shape = 's32[1]{0}', space=sflag, size = 0x4, scoped, tag = 'scoped memory for tpu_custom_call.1']
    #allocation4 [shape = 's32[1]{0}', space=sflag, size = 0x4, scoped, tag = 'scoped memory for tpu_custom_call.1']
    #allocation5 [shape = 'u8[143360]{0}', space=vmem, size = 0x23000, scoped, tag = 'input window, operand 1, single buffered']
    #allocation6 [shape = 's32[1]{0}', space=sflag, size = 0x4, scoped, tag = 'scoped memory for tpu_custom_call.1']
    #allocation7 [shape = 'u8[4096]{0}', space=vmem, size = 0x1000, scoped, tag = 'output window, operand 0, single buffered']
    %7 = vsyncpa [#allocation3], 0
    %8 = vsyncpa [#allocation6], 0
    %9 = vsyncpa [#allocation4], 0
    // Predicated region
    $region2: #{tpu_custom_call.1} parent=1 // pred_check
      _
    $region3: #{tpu_custom_call.1} parent=1 // pred_check_branch
      %11 = sbr.rel (0) target = $region5
    $region4: #{tpu_custom_call.1} parent=1 // pred_region
      %13 = vsyncadd [#allocation3], 0
      %s15 = sshll.u32 %s0, 4
      %s16 = int_to_ptr.hbm [resolvable:$true] %s15
      %s17 = sshll.u32 [#allocation2], 4
      %s18 = int_to_ptr.vmem [resolvable:$true] %s17
      %20 = dma.hbm_to_vmem [thread:$0]  %s16, 128, %s18, [#allocation3]
    $region5: #{tpu_custom_call.1} parent=1 // pred_fallthru
      _
    // Predicated region
    $region6: #{tpu_custom_call.1} parent=1 // pred_check
      _
    $region7: #{tpu_custom_call.1} parent=1 // pred_check_branch
      %22 = sbr.rel (0) target = $region9
    $region8: #{tpu_custom_call.1} parent=1 // pred_region
      %24 = vsyncadd [#allocation6], 0
      %s25 = sshll.u32 %s1, 4
      %s26 = int_to_ptr.hbm [resolvable:$true] %s25
      %s27 = sshll.u32 [#allocation5], 4
      %s28 = int_to_ptr.vmem [resolvable:$true] %s27
      %33 = dma.hbm_to_vmem [thread:$0]  %s26, 4480, %s28, [#allocation6], 128, 128, 8
    $region9: #{tpu_custom_call.1} parent=1 // pred_fallthru
      _
    // Predicated region
    $region10: #{tpu_custom_call.1} parent=1 // pred_check
      _
    $region11: #{tpu_custom_call.1} parent=1 // pred_check_branch
      %35 = sbr.rel (0) target = $region13
    $region12: #{tpu_custom_call.1} parent=1 // pred_region
      %37 = dma.done [#allocation3], 128
    $region13: #{tpu_custom_call.1} parent=1 // pred_fallthru
      _
    // Predicated region
    $region14: #{tpu_custom_call.1} parent=1 // pred_check
      _
    $region15: #{tpu_custom_call.1} parent=1 // pred_check_branch
      %39 = sbr.rel (0) target = $region17
    $region16: #{tpu_custom_call.1} parent=1 // pred_region
      %41 = dma.done [#allocation6], 4480
    $region17: #{tpu_custom_call.1} parent=1 // pred_fallthru
      _
    %v42 = vld [vmem:[#allocation2] sm:$0xff]
    %v43 = vld [vmem:[#allocation5] sm:$0xff]
    %v44 = vld [vmem:[#allocation5 + $0x8] sm:$0xff]
    %v45 = vld [vmem:[#allocation5 + $0x10] sm:$0xff]
    %v46 = vld [vmem:[#allocation5 + $0x18] sm:$0xff]
    %v47 = vld [vmem:[#allocation5 + $0x20] sm:$0xff]
    %v48 = vld [vmem:[#allocation5 + $0x28] sm:$0xff]
    %v49 = vld [vmem:[#allocation5 + $0x30] sm:$0xff]
    %v50 = vld [vmem:[#allocation5 + $0x38] sm:$0xff]
    %v51 = vld [vmem:[#allocation5 + $0x40] sm:$0xff]
    %v52 = vld [vmem:[#allocation5 + $0x48] sm:$0xff]
    %v53 = vld [vmem:[#allocation5 + $0x50] sm:$0xff]
    %v54 = vld [vmem:[#allocation5 + $0x58] sm:$0xff]
    %v55 = vld [vmem:[#allocation5 + $0x60] sm:$0xff]
    %v56 = vld [vmem:[#allocation5 + $0x68] sm:$0xff]
    %v57 = vld [vmem:[#allocation5 + $0x70] sm:$0xff]
    %v58 = vld [vmem:[#allocation5 + $0x78] sm:$0xff]
    %v59 = vld [vmem:[#allocation5 + $0x80] sm:$0xff]
    %v60 = vld [vmem:[#allocation5 + $0x88] sm:$0xff]
    %v61 = vld [vmem:[#allocation5 + $0x90] sm:$0xff]
    %v62 = vld [vmem:[#allocation5 + $0x98] sm:$0xff]
    %v63 = vld [vmem:[#allocation5 + $0xa0] sm:$0xff]
    %v64 = vld [vmem:[#allocation5 + $0xa8] sm:$0xff]
    %v65 = vld [vmem:[#allocation5 + $0xb0] sm:$0xff]
    %v66 = vld [vmem:[#allocation5 + $0xb8] sm:$0xff]
    %v67 = vld [vmem:[#allocation5 + $0xc0] sm:$0xff]
    %v68 = vld [vmem:[#allocation5 + $0xc8] sm:$0xff]
    %v69 = vld [vmem:[#allocation5 + $0xd0] sm:$0xff]
    %v70 = vld [vmem:[#allocation5 + $0xd8] sm:$0xff]
    %v71 = vld [vmem:[#allocation5 + $0xe0] sm:$0xff]
    %v72 = vld [vmem:[#allocation5 + $0xe8] sm:$0xff]
    %v73 = vld [vmem:[#allocation5 + $0xf0] sm:$0xff]
    %v74 = vld [vmem:[#allocation5 + $0xf8] sm:$0xff]
    %v75 = vld [vmem:[#allocation5 + $0x100] sm:$0xff]
    %v76 = vld [vmem:[#allocation5 + $0x108] sm:$0xff]
    %v77 = vld [vmem:[#allocation5 + $0x110] sm:$0x1]
    %v78 = vld [vmem:[#allocation5 + $0x111] sm:$0x1]
    %v79 = vld [vmem:[#allocation5 + $0x112] sm:$0x1]
    %v80 = vld [vmem:[#allocation5 + $0x113] sm:$0x1]
    %v81 = vld [vmem:[#allocation5 + $0x114] sm:$0x1]
    %vm82 = vcmask 130048
    %v83 = vsel %vm82, %v42, 0.0
    %v84 = vrot.slane %v83, 4
    %v85 = vadd.f32 %v83, %v84
    %v86 = vrot.slane %v85, 2
    %v87 = vadd.f32 %v85, %v86
    %v88 = vrot.slane %v87, 1
    %v89 = vadd.f32 %v87, %v88
    %v90 = vmul.f32 %v89, 0.125
    %v91 = vmul.f32 %v42, %v42
    %v92 = vsel %vm82, %v91, 0.0
    %v93 = vrot.slane %v92, 4
    %v94 = vadd.f32 %v92, %v93
    %v95 = vrot.slane %v94, 2
    %v96 = vadd.f32 %v94, %v95
    %v97 = vrot.slane %v96, 1
    %v98 = vadd.f32 %v96, %v97
    %v99 = vmul.f32 %v98, 0.125
    %v100 = vmul.f32 %v90, %v90
    %v101 = vsub.f32 %v99, %v100
    %v102 = vadd.f32 %v101, 1e-05
    %v103 = vrsqrt.pop %v102
    %v104 = vmul.f32 %v103, %v102
    %v105 = vmul.f32 %v104, %v103
    %v106 = vmul.f32 0.5, %v105
    %v107 = vsub.f32 1.5, %v106
    %v108 = vmul.f32 %v103, %v107
    %vm109 = vweird.f32 %v102
    %vm110 = vweird.f32 %v103
    %vm111 = vmor %vm109, %vm110
    %v112 = vsel %vm111, %v103, %v108
    %v113 = vmul.f32 %v77, %v112
    %v114 = vmul.f32 %v90, %v113
    %v115 = vsub.f32 %v78, %v114
    %v116 = vperm.slane %v113, 0
    %v117 = vmul.f32 %v42, %v116
    %v118 = vperm.slane %v115, 0
    %v119 = vadd.f32 %v117, %v118
    %v120 = vperm.slane %v79, 0
    %v122 = vsel %vm82, %v119, 0
    %124 = vmatpush.msra.mxu0 0.0
    %125 = vmatpush.msra.mxu0 0.0
    %126 = vmatpush.msra.mxu0 0.0
    %127 = vmatpush.msra.mxu0 0.0
    %128 = vmatpush.msra.mxu0 0.0
    %129 = vmatpush.msra.mxu0 0.0
    %130 = vmatpush.msra.mxu0 0.0
    %131 = vmatpush.msra.mxu0 0.0
    %132 = vmatpush.msra.mxu0 0.0
    %133 = vmatpush.msra.mxu0 0.0
    %134 = vmatpush.msra.mxu0 0.0
    %135 = vmatpush.msra.mxu0 0.0
    %136 = vmatpush.msra.mxu0 0.0
    %137 = vmatpush.msra.mxu0 0.0
    %138 = vmatpush.msra.mxu0 %v44
    %139 = vmatpush.msra.mxu0 %v43
    %140 = vmatmul.f32.gmra.mxu0 %v122
    %v141 = vpop.f32.mrf.mxu0
    %v142 = vadd.f32 %v120, %v141
    %143 = vdwg.mxu0
    %v144 = vmul.f32 %v142, 0.01
    %v145 = vmax.f32 %v142, %v144
    %v146 = vperm.slane %v80, 0
    %147 = vmatpush.msra.mxu0 %v60
    %148 = vmatpush.msra.mxu0 %v59
    %149 = vmatpush.msra.mxu0 %v58
    %150 = vmatpush.msra.mxu0 %v57
    %151 = vmatpush.msra.mxu0 %v56
    %152 = vmatpush.msra.mxu0 %v55
    %153 = vmatpush.msra.mxu0 %v54
    %154 = vmatpush.msra.mxu0 %v53
    %155 = vmatpush.msra.mxu0 %v52
    %156 = vmatpush.msra.mxu0 %v51
    %157 = vmatpush.msra.mxu0 %v50
    %158 = vmatpush.msra.mxu0 %v49
    %159 = vmatpush.msra.mxu0 %v48
    %160 = vmatpush.msra.mxu0 %v47
    %161 = vmatpush.msra.mxu0 %v46
    %162 = vmatpush.msra.mxu0 %v45
    %163 = vmatmul.f32.gmra.mxu0 %v145
    %v164 = vpop.f32.mrf.mxu0
    %v165 = vadd.f32 %v146, %v164
    %166 = vdwg.mxu0
    %v167 = vmul.f32 %v165, 0.01
    %v168 = vmax.f32 %v165, %v167
    %v169 = vperm.slane %v81, 0
    %170 = vmatpush.msra.mxu0 %v76
    %171 = vmatpush.msra.mxu0 %v75
    %172 = vmatpush.msra.mxu0 %v74
    %173 = vmatpush.msra.mxu0 %v73
    %174 = vmatpush.msra.mxu0 %v72
    %175 = vmatpush.msra.mxu0 %v71
    %176 = vmatpush.msra.mxu0 %v70
    %177 = vmatpush.msra.mxu0 %v69
    %178 = vmatpush.msra.mxu0 %v68
    %179 = vmatpush.msra.mxu0 %v67
    %180 = vmatpush.msra.mxu0 %v66
    %181 = vmatpush.msra.mxu0 %v65
    %182 = vmatpush.msra.mxu0 %v64
    %183 = vmatpush.msra.mxu0 %v63
    %184 = vmatpush.msra.mxu0 %v62
    %185 = vmatpush.msra.mxu0 %v61
    %186 = vmatmul.f32.gmra.mxu0 %v168
    %v187 = vpop.f32.mrf.mxu0
    %v188 = vadd.f32 %v169, %v187
    %189 = vdwg.mxu0
    %v190 = vtanh.pop %v188
    %191 = vst [vmem:[#allocation7] sm:$0xff] %v190
    // Predicated region
    $region18: #{tpu_custom_call.1} parent=1 // pred_check
      _
    $region19: #{tpu_custom_call.1} parent=1 // pred_check_branch
      %193 = sbr.rel (0) target = $region21
    $region20: #{tpu_custom_call.1} parent=1 // pred_region
      %195 = vsyncadd [#allocation4], 0
      %s197 = sshll.u32 [#allocation7], 4
      %s198 = int_to_ptr.vmem [resolvable:$true] %s197
      %s199 = sshll.u32 %s2, 4
      %s200 = int_to_ptr.hbm [resolvable:$true] %s199
      %202 = dma.vmem_to_hbm [thread:$0]  %s198, 128, %s200, [#allocation4]
    $region21: #{tpu_custom_call.1} parent=1 // pred_fallthru
      _
    // Predicated region
    $region22: #{tpu_custom_call.1} parent=1 // pred_check
      _
    $region23: #{tpu_custom_call.1} parent=1 // pred_check_branch
      %204 = sbr.rel (0) target = $region25
    $region24: #{tpu_custom_call.1} parent=1 // pred_region
      %206 = dma.done [#allocation4], 128
    $region25: #{tpu_custom_call.1} parent=1 // pred_fallthru
      _
    %207 = vsyncpa [#allocation3], 1
    %208 = vsyncpa [#allocation6], 1
    %209 = vsyncpa [#allocation4], 1

</llo_original>
